<compile_context>
chip_gen: v7x
topology: tpu7x:2x2x1
jax: 0.10.0
libtpu: 0.0.40
codegen_flags: <defaults>
</compile_context>

<pallas_src>
import jax
import jax.numpy as jnp
from jax.experimental import pallas as pl
from jax.experimental.pallas import tpu as pltpu


def bilinear_matrix(out_size: int, in_size: int) -> jnp.ndarray:
    """1-D bilinear interpolation matrix, PyTorch align_corners=False semantics
    (the F.upsample / F.interpolate default)."""
    i = jnp.arange(out_size, dtype=jnp.float32)
    src = (i + 0.5) * (in_size / out_size) - 0.5
    src = jnp.maximum(src, 0.0)
    i0 = jnp.minimum(jnp.floor(src).astype(jnp.int32), in_size - 1)
    i1 = jnp.minimum(i0 + 1, in_size - 1)
    frac = src - i0.astype(jnp.float32)
    rows = jnp.arange(out_size)
    m = jnp.zeros((out_size, in_size), jnp.float32)
    m = m.at[rows, i0].add(1.0 - frac)
    m = m.at[rows, i1].add(frac)
    return m


def _attention_gate_kernel(feat_ref, gsm_ref, wx_ref, rt_ref, psiw_ref,
                           psib_ref, out_ref):
    cdt = wx_ref.dtype                       # MXU compute dtype (bf16 or f32)
    feat = feat_ref[0]                       # (Cf, Sblk)  lane-dense, f32

    # x = Wx(feature): 1x1 conv == channel matmul on the MXU, f32 accumulate.
    x = jnp.dot(wx_ref[...], feat.astype(cdt),
                preferred_element_type=jnp.float32)              # (Ch, Sblk)

    # g = bilinear upsample (to feature resolution) of Wg(attention)+bias.
    # Wg was applied once at gate resolution in the wrapper; the upsample is a
    # single lane-dense matmul against this tile's slice of kron(Rh, Rw)^T.
    g = jnp.dot(gsm_ref[0], rt_ref[...],
                preferred_element_type=jnp.float32)              # (Ch, Sblk)

    # relu(x + g): f32 VPU epilogue (v5e has no bf16 VPU path).
    s = jnp.maximum(x + g, 0.0)

    # psi: Ch -> 1 projection on the (otherwise idle) MXU; weights padded to 8
    # sublanes, only row 0 is real.
    q8 = jnp.dot(psiw_ref[...], s.astype(cdt),
                 preferred_element_type=jnp.float32)             # (8, Sblk)
    q = q8[0:1, :] + psib_ref[0, 0]
    alpha = jax.nn.sigmoid(q)                                    # (1, Sblk)

    # The second F.upsample(q_att -> feature size) is an identity: q_att is
    # already at the feature resolution (1x1 convs preserve H, W).
    out_ref[0] = (alpha * feat).astype(out_ref.dtype)


def _vmem_capacity_bytes() -> int:
    try:
        return int(pltpu.get_tpu_info().vmem_capacity_bytes)
    except Exception:
        return 64 * 1024 * 1024              # v7x floor: 64 MiB per TensorCore


def _estimate_vmem(Cf, Ch, P, Sblk, feat_bytes, c_bytes):
    # Double-buffered pipeline blocks ...
    blk = (Cf * Sblk * feat_bytes            # feature tile in
           + Cf * Sblk * feat_bytes          # output tile
           + P * Sblk * c_bytes              # kron(Rh,Rw)^T slice
           + Ch * P * c_bytes                # g_small (gate at gate resolution)
           + Ch * Cf * c_bytes               # Wx
           + 8 * Ch * c_bytes)               # psi weights (padded)
    # ... plus in-kernel f32 intermediates (x, g, s, q, casts, out value).
    work = (4 * Ch + 2 * Cf + 4) * Sblk * 4
    return 2 * blk + work


def _pick_tile_h(Hf, Wf, Cf, Ch, P, feat_bytes, c_bytes, vmem_budget,
                 max_lanes=16384):
    """Largest divisor h of Hf whose (h*Wf)-lane block is lane-aligned (or the
    full array), sublane-legal for the Rh/R^T slice, and fits the VMEM budget."""
    for h in range(Hf, 0, -1):
        if Hf % h:
            continue
        sblk = h * Wf
        if sblk > max_lanes:
            continue
        if not (sblk % 128 == 0 or h == Hf):
            continue
        if not (h % 8 == 0 or h == Hf):
            continue
        if _estimate_vmem(Cf, Ch, P, sblk, feat_bytes, c_bytes) > vmem_budget:
            continue
        return h
    return Hf


def attention_gate(feature, attention, params, tile_h=None,
                   mxu_dtype=jnp.bfloat16):
    """feature: (N, Cf, Hf, Wf) NCHW; attention: (N, Cg, Hg, Wg) NCHW."""
    N, Cf, Hf, Wf = feature.shape
    _, Cg, Hg, Wg = attention.shape
    Ch = params["wx"].shape[0]
    P = Hg * Wg

    vmem_cap = _vmem_capacity_bytes()
    vmem_budget = (3 * vmem_cap) // 4        # ~25% headroom (v7x: 64 MiB/TC)

    feat_bytes = jnp.dtype(feature.dtype).itemsize
    c_bytes = jnp.dtype(mxu_dtype).itemsize
    if tile_h is None:
        tile_h = _pick_tile_h(Hf, Wf, Cf, Ch, P, feat_bytes, c_bytes, vmem_budget)
    assert Hf % tile_h == 0, "tile_h must divide Hf"
    Sblk = tile_h * Wf
    assert Sblk % 128 == 0 or tile_h == Hf, "spatial tile must be lane-aligned or full"
    assert tile_h % 8 == 0 or tile_h == Hf, "tile must be sublane-aligned or full"
    n_ht = Hf // tile_h

    # Free reshapes only (NCHW already has W minor): no wrapper transposes.
    feat_cf = feature.reshape(N, Cf, Hf * Wf)                     # (N, Cf, Hf*Wf)

    # Wg applied ONCE at gate resolution (tiny), bias folded in.  Operands
    # destined for the MXU are pre-cast to the compute dtype (bf16: ~3x fewer
    # MXU passes, half the operand VMEM/HBM traffic; accumulation stays f32).
    att_flat = attention.reshape(N, Cg, P).astype(jnp.float32)
    g_small = (jnp.einsum("oc,ncp->nop", params["wg"].astype(jnp.float32), att_flat)
               + params["wg_b"].reshape(1, Ch, 1).astype(jnp.float32)
               ).astype(mxu_dtype)                                # (N, Ch, P)

    # Bilinear upsample operator: R^T = kron(Rh, Rw)^T, sliced per spatial
    # tile by its BlockSpec (only the (P, Sblk) slice ever lives in VMEM).
    rh = bilinear_matrix(Hf, Hg)                                  # (Hf, Hg)
    rw = bilinear_matrix(Wf, Wg)                                  # (Wf, Wg)
    rT = jnp.kron(rh, rw).T.astype(mxu_dtype)                     # (Hg*Wg, Hf*Wf)

    wx = params["wx"].astype(mxu_dtype)                           # (Ch, Cf)
    psiw8 = jnp.zeros((8, Ch), jnp.float32).at[0].set(params["psi_w"][:, 0])
    psiw8 = psiw8.astype(mxu_dtype)                               # (8, Ch)
    psib = params["psi_b"].reshape(1, 1).astype(jnp.float32)      # SMEM scalar

    est = _estimate_vmem(Cf, Ch, P, Sblk, feat_bytes, c_bytes)
    vmem_limit = int(min(vmem_budget, max(2 * est, 16 * 1024 * 1024)))

    out_flat = pl.pallas_call(
        _attention_gate_kernel,
        out_shape=jax.ShapeDtypeStruct((N, Cf, Hf * Wf), feature.dtype),
        grid=(N, n_ht),
        in_specs=[
            # If profiling shows exposed feature DMA at very large Sblk, add
            # pipeline_mode=pl.Buffered(3) here (Cf is small, cost is low).
            pl.BlockSpec((1, Cf, Sblk), lambda n, t: (n, 0, t)),   # feature tile
            pl.BlockSpec((1, Ch, P), lambda n, t: (n, 0, 0)),      # Wg(att)+b @ gate res
            pl.BlockSpec((Ch, Cf), lambda n, t: (0, 0)),           # Wx
            pl.BlockSpec((P, Sblk), lambda n, t: (0, t)),          # kron(Rh,Rw)^T slice
            pl.BlockSpec((8, Ch), lambda n, t: (0, 0)),            # psi weight (padded)
            pl.BlockSpec(memory_space=pltpu.MemorySpace.SMEM),     # psi bias scalar
        ],
        out_specs=pl.BlockSpec((1, Cf, Sblk), lambda n, t: (n, 0, t)),
        compiler_params=pltpu.CompilerParams(
            dimension_semantics=("parallel", "parallel"),
            vmem_limit_bytes=vmem_limit),
    )(feat_cf, g_small, wx, rT, psiw8, psib)

    return out_flat.reshape(N, Cf, Hf, Wf)


def attention_gate_reference(feature, attention, params):
    """Pure-JAX f32 reference (same PyTorch bilinear semantics) for validation."""
    N, Cf, Hf, Wf = feature.shape
    _, Cg, Hg, Wg = attention.shape
    rh = bilinear_matrix(Hf, Hg)
    rw = bilinear_matrix(Wf, Wg)
    x = jnp.einsum("oc,nchw->nohw", params["wx"], feature)
    g = jnp.einsum("oc,nchw->nohw", params["wg"], attention) \
        + params["wg_b"].reshape(1, -1, 1, 1)
    g = jnp.einsum("ih,nchw->nciw", rh, g)     # H upsample
    g = jnp.einsum("jw,nciw->ncij", rw, g)     # W upsample
    s = jnp.maximum(x + g, 0.0)
    q = jnp.einsum("c,nchw->nhw", params["psi_w"][:, 0], s)[:, None] \
        + params["psi_b"][0, 0]
    alpha = jax.nn.sigmoid(q)
    return alpha * feature


if __name__ == "__main__":
    # Small shapes consistent with the module:
    # feature_channels=4, gate_channels=8, hidden_channels=32
    N, Cf, Cg, Ch = 2, 4, 8, 32
    Hf = Wf = 16      # feature spatial
    Hg = Wg = 8       # gate spatial (coarser, bilinearly upsampled)

    key = jax.random.PRNGKey(0)
    k1, k2, k3, k4, k5, k6, k7 = jax.random.split(key, 7)
    feature = jax.random.normal(k1, (N, Cf, Hf, Wf), jnp.float32)
    attention = jax.random.normal(k2, (N, Cg, Hg, Wg), jnp.float32)

    # Parameters in channels-first matmul orientation (= conv.weight[:, :, 0, 0]):
    params = {
        "wx": 0.1 * jax.random.normal(k3, (Ch, Cf), jnp.float32),     # Conv2d(Cf->Ch, 1x1, no bias)
        "wg": 0.1 * jax.random.normal(k4, (Ch, Cg), jnp.float32),     # Conv2d(Cg->Ch, 1x1, bias)
        "wg_b": 0.1 * jax.random.normal(k5, (Ch, 1), jnp.float32),
        "psi_w": 0.1 * jax.random.normal(k6, (Ch, 1), jnp.float32),   # Conv2d(Ch->1, 1x1, bias)
        "psi_b": 0.1 * jax.random.normal(k7, (1, 1), jnp.float32),
    }

    ref = attention_gate_reference(feature, attention, params)

    # Exact-math path (f32 MXU operands): tight check.
    out_f32 = attention_gate(feature, attention, params, mxu_dtype=jnp.float32)
    jax.block_until_ready(out_f32)
    assert out_f32.shape == feature.shape
    err_f32 = float(jnp.max(jnp.abs(out_f32 - ref)))
    assert err_f32 < 2e-5, err_f32

    # Default perf path (bf16 MXU operands, f32 accumulate + f32 epilogue):
    # tolerance relaxed per review.
    out = attention_gate(feature, attention, params)
    jax.block_until_ready(out)
    assert out.shape == feature.shape
    err_bf16 = float(jnp.max(jnp.abs(out - ref)))
    assert err_bf16 < 3e-2, err_bf16

    print("KERNEL_OK")
</pallas_src>

<mosaic_0001>
module attributes {stable_mosaic.version = 11 : i64} {
  func.func @_attention_gate_kernel(%arg0: i32, %arg1: i32, %arg2: memref<1x4x256xf32, #tpu.memory_space<vmem>>, %arg3: memref<1x32x64xf32, #tpu.memory_space<vmem>>, %arg4: memref<32x4xf32, #tpu.memory_space<vmem>>, %arg5: memref<64x256xf32, #tpu.memory_space<vmem>>, %arg6: memref<8x32xf32, #tpu.memory_space<vmem>>, %arg7: memref<1x1xf32, #tpu.memory_space<smem>>, %arg8: memref<1x4x256xf32, #tpu.memory_space<vmem>>) attributes {dimension_semantics = [#tpu.dimension_semantics<parallel>, #tpu.dimension_semantics<parallel>], iteration_bounds = array<i64: 2, 1>, scalar_prefetch = 0 : i64, scratch_operands = 0 : i64, tpu.core_type = #tpu.core_type<tc>, window_params = [{transform_indices = @transform_0, window_bounds = array<i64: 1, 4, 256>}, {transform_indices = @transform_1, window_bounds = array<i64: 1, 32, 64>}, {pipeline_mode = #tpu.pipeline_mode<synchronous>, transform_indices = @transform_2, window_bounds = array<i64: 32, 4>}, {transform_indices = @transform_3, window_bounds = array<i64: 64, 256>}, {pipeline_mode = #tpu.pipeline_mode<synchronous>, transform_indices = @transform_4, window_bounds = array<i64: 8, 32>}, {transform_indices = @transform_5, window_bounds = array<i64: 1, 1>}, {transform_indices = @transform_6, window_bounds = array<i64: 1, 4, 256>}]} {
    %c0 = arith.constant 0 : index
    %c0_0 = arith.constant 0 : index
    %c0_1 = arith.constant 0 : index
    %0 = vector.load %arg2[%c0, %c0_0, %c0_1] : memref<1x4x256xf32, #tpu.memory_space<vmem>>, vector<1x4x256xf32>
    %1 = vector.shape_cast %0 : vector<1x4x256xf32> to vector<4x256xf32>
    %c0_2 = arith.constant 0 : index
    %c0_3 = arith.constant 0 : index
    %2 = vector.load %arg4[%c0_2, %c0_3] : memref<32x4xf32, #tpu.memory_space<vmem>>, vector<32x4xf32>
    %cst = arith.constant dense<0.000000e+00> : vector<32x256xf32>
    %3 = tpu.matmul %2, %1, %cst {dimension_numbers = #tpu.dot_dimension_numbers<[1], [0], [0], [1], [0, 0, 1, 1], [], []>} : vector<32x4xf32>, vector<4x256xf32>, vector<32x256xf32> -> vector<32x256xf32>
    %c0_4 = arith.constant 0 : index
    %c0_5 = arith.constant 0 : index
    %c0_6 = arith.constant 0 : index
    %4 = vector.load %arg3[%c0_4, %c0_5, %c0_6] : memref<1x32x64xf32, #tpu.memory_space<vmem>>, vector<1x32x64xf32>
    %5 = vector.shape_cast %4 : vector<1x32x64xf32> to vector<32x64xf32>
    %c0_7 = arith.constant 0 : index
    %c0_8 = arith.constant 0 : index
    %6 = vector.load %arg5[%c0_7, %c0_8] : memref<64x256xf32, #tpu.memory_space<vmem>>, vector<64x256xf32>
    %cst_9 = arith.constant dense<0.000000e+00> : vector<32x256xf32>
    %7 = tpu.matmul %5, %6, %cst_9 {dimension_numbers = #tpu.dot_dimension_numbers<[1], [0], [0], [1], [0, 0, 1, 1], [], []>} : vector<32x64xf32>, vector<64x256xf32>, vector<32x256xf32> -> vector<32x256xf32>
    %8 = arith.addf %3, %7 : vector<32x256xf32>
    %cst_10 = arith.constant 0.000000e+00 : f32
    %9 = vector.broadcast %cst_10 : f32 to vector<32x256xf32>
    %10 = arith.maximumf %8, %9 : vector<32x256xf32>
    %c0_11 = arith.constant 0 : index
    %c0_12 = arith.constant 0 : index
    %11 = vector.load %arg6[%c0_11, %c0_12] : memref<8x32xf32, #tpu.memory_space<vmem>>, vector<8x32xf32>
    %cst_13 = arith.constant dense<0.000000e+00> : vector<8x256xf32>
    %12 = tpu.matmul %11, %10, %cst_13 {dimension_numbers = #tpu.dot_dimension_numbers<[1], [0], [0], [1], [0, 0, 1, 1], [], []>} : vector<8x32xf32>, vector<32x256xf32>, vector<8x256xf32> -> vector<8x256xf32>
    %13 = vector.extract_strided_slice %12 {offsets = [0, 0], sizes = [1, 256], strides = [1, 1]} : vector<8x256xf32> to vector<1x256xf32>
    %c0_14 = arith.constant 0 : index
    %c0_15 = arith.constant 0 : index
    %14 = memref.load %arg7[%c0_14, %c0_15] : memref<1x1xf32, #tpu.memory_space<smem>>
    %15 = vector.broadcast %14 : f32 to vector<1x256xf32>
    %16 = arith.addf %13, %15 : vector<1x256xf32>
    %17 = arith.negf %16 : vector<1x256xf32>
    %18 = math.exp %17 : vector<1x256xf32>
    %cst_16 = arith.constant 1.000000e+00 : f32
    %19 = vector.broadcast %cst_16 : f32 to vector<1x256xf32>
    %20 = arith.addf %19, %18 : vector<1x256xf32>
    %21 = arith.divf %19, %20 : vector<1x256xf32>
    %22 = vector.broadcast %21 : vector<1x256xf32> to vector<4x256xf32>
    %23 = arith.mulf %22, %1 : vector<4x256xf32>
    %c0_17 = arith.constant 0 : index
    %c0_18 = arith.constant 0 : index
    %c0_19 = arith.constant 0 : index
    %24 = vector.load %arg8[%c0_17, %c0_18, %c0_19] : memref<1x4x256xf32, #tpu.memory_space<vmem>>, vector<1x4x256xf32>
    %25 = vector.shape_cast %24 : vector<1x4x256xf32> to vector<4x256xf32>
    %26 = vector.shape_cast %23 : vector<4x256xf32> to vector<1x4x256xf32>
    tpu.vector_store %arg8[%c0_17, %c0_18, %c0_19], %26 {strides = array<i32>} : memref<1x4x256xf32, #tpu.memory_space<vmem>>, vector<1x4x256xf32>,
    return
  }
  func.func @transform_0(%arg0: i32, %arg1: i32) -> (i32, i32, i32) {
    %c0_i32 = arith.constant 0 : i32
    %c0_i32_0 = arith.constant 0 : i32
    return %arg0, %c0_i32, %arg1 : i32, i32, i32
  }
  func.func @transform_1(%arg0: i32, %arg1: i32) -> (i32, i32, i32) {
    %c0_i32 = arith.constant 0 : i32
    %c0_i32_0 = arith.constant 0 : i32
    %c0_i32_1 = arith.constant 0 : i32
    return %arg0, %c0_i32, %c0_i32_0 : i32, i32, i32
  }
  func.func @transform_2(%arg0: i32, %arg1: i32) -> (i32, i32) {
    %c0_i32 = arith.constant 0 : i32
    %c0_i32_0 = arith.constant 0 : i32
    %c0_i32_1 = arith.constant 0 : i32
    return %c0_i32, %c0_i32_0 : i32, i32
  }
  func.func @transform_3(%arg0: i32, %arg1: i32) -> (i32, i32) {
    %c0_i32 = arith.constant 0 : i32
    %c0_i32_0 = arith.constant 0 : i32
    return %c0_i32, %arg1 : i32, i32
  }
  func.func @transform_4(%arg0: i32, %arg1: i32) -> (i32, i32) {
    %c0_i32 = arith.constant 0 : i32
    %c0_i32_0 = arith.constant 0 : i32
    %c0_i32_1 = arith.constant 0 : i32
    return %c0_i32, %c0_i32_0 : i32, i32
  }
  func.func @transform_5(%arg0: i32, %arg1: i32) -> (i32, i32) {
    %c0_i32 = arith.constant 0 : i32
    %c0_i32_0 = arith.constant 0 : i32
    %c0_i32_1 = arith.constant 0 : i32
    return %c0_i32, %c0_i32_0 : i32, i32
  }
  func.func @transform_6(%arg0: i32, %arg1: i32) -> (i32, i32, i32) {
    %c0_i32 = arith.constant 0 : i32
    %c0_i32_0 = arith.constant 0 : i32
    return %arg0, %c0_i32, %arg1 : i32, i32, i32
  }
}

</mosaic_0001>

<llo_original>
// kernel: tpu_custom_call.1
$region0: #{tpu_custom_call.1}
  #allocation0 [shape = 'u32[]', space=smem, size = 0x4, offset = 0x4, fixed_abs, tag = 'smem constant byte address 0x4 - core index']
  #allocation1 [shape = 'u32[144,128]{1,0:T(1,128)}', space=vmem, size = 0x12000, scoped, tag = 'internal scratch']
  #allocation2 [shape = 'f32[1,1]{1,0:T(1,128)S(6)}', space=smem, size = 0x200, scoped, tag = 'scoped memory for tpu_custom_call.1']
  %s0 = inlined_call_operand.vmem [shape: f32[2,4,256], index: 0, kind: input, shape index: {}]
  %s1 = inlined_call_operand.hbm [shape: f32[2,32,64], index: 1, kind: input, shape index: {}]
  %s2 = inlined_call_operand.vmem [shape: f32[32,4], index: 2, kind: input, shape index: {}]
  %s3 = inlined_call_operand.hbm [shape: f32[64,256], index: 3, kind: input, shape index: {}]
  %s4 = inlined_call_operand.vmem [shape: f32[8,32], index: 4, kind: input, shape index: {}]
  %s5 = inlined_call_operand.<no memory space> [shape: f32[1,1], index: 5, kind: input, shape index: {}]
  %s6 = inlined_call_operand.hbm [shape: f32[2,4,256], index: 6, kind: output, shape index: {}]
  %s7 = sld [smem:[#allocation0]]
  $region65: #{tpu_custom_call.1} parent=0
    _
  %s9 = ssub.s32 1, %s7
  %s10 = scalar_select 0, %s9, %s7
  %11 = sst [smem:[#allocation2]] %s5
  $region1: #{tpu_custom_call.1} parent=0
    #allocation3 [shape = 'u8[32768]{0}', space=vmem, size = 0x8000, scoped, tag = 'input window, operand 1']
    #allocation4 [shape = 's32[2]{0}', space=sflag, size = 0x8, scoped, tag = 'scoped memory for tpu_custom_call.1']
    #allocation5 [shape = 's32[2]{0}', space=sflag, size = 0x8, scoped, tag = 'scoped memory for tpu_custom_call.1']
    #allocation6 [shape = 'u8[65536]{0}', space=vmem, size = 0x10000, scoped, tag = 'input window, operand 3, single buffered']
    #allocation7 [shape = 's32[1]{0}', space=sflag, size = 0x4, scoped, tag = 'scoped memory for tpu_custom_call.1']
    #allocation8 [shape = 'u8[8192]{0}', space=vmem, size = 0x2000, scoped, tag = 'output window, operand 0']
    %12 = vsyncpa [#allocation4], 0
    %s13 = scalar_lea.sflag [#allocation4], 1
    %14 = vsyncpa %s13, 0
    %15 = vsyncpa [#allocation7], 0
    %16 = vsyncpa [#allocation5], 0
    %s17 = scalar_lea.sflag [#allocation5], 1
    %18 = vsyncpa %s17, 0
    loop: start=0, step=1, limit=4
    $region2: #{tpu_custom_call.1} parent=1 // loop_pre_header
      _
    $region3: #{tpu_custom_call.1} parent=1 // loop_header
      %s20 = sphi 0, %s24
      %p21 = scmp.ge.s32.totalorder %s20, 4
      %s27 = sphi 0, %s39
      %s28 = sphi 0, %s35
      %s29 = sphi 0, %s27
      %s30 = sphi 0, %s28
      %s31 = sphi 0, %s29
      %s32 = sphi 0, %s30
      %s44 = sphi 0, %s46
      %s47 = sphi 0, %s44
      %s48 = sphi 0, %s47
      %s64 = sphi 0, %s48
      %s70 = sphi 0, %s72
      %s73 = sphi 0, %s70
      %s74 = sphi 0, %s73
      %s90 = sphi 0, %s74
      %s94 = sphi 0, %s94
      %s96 = sphi 0, %s94
      %s97 = sphi 0, %s96
      %s111 = sphi 0, %s97
      %s117 = sphi 0, %s119
      %s120 = sphi 0, %s117
      %s121 = sphi 0, %s120
      %s137 = sphi 0, %s121
      %s141 = sphi 0, %s141
      %s143 = sphi 0, %s141
      %s144 = sphi 0, %s143
      %s158 = sphi 0, %s144
      %s162 = sphi 0, %s162
      %s164 = sphi 0, %s162
      %s165 = sphi 0, %s164
      %s179 = sphi 0, %s165
      %s187 = sphi 0, %s189
      %s190 = sphi 0, %s187
      %s191 = sphi 0, %s190
      %s207 = sphi 0, %s191
    $region4: #{tpu_custom_call.1} parent=1 // loop_header_branch
      %23 = sbr.rel (%p21) target = $region8
    $region5: #{tpu_custom_call.1} parent=1 // loop_body
      %s25 = ssub.s32 %s20, 1
      %s26 = ssub.s32 %s20, 2
      %s33 = sadd.s32 1, %s28
      %p34 = scmp.ge.s32.totalorder %s33, 1
      %s35 = scalar_select %p34, 0, %s33
      %s36 = sadd.s32 1, %s27
      %s37 = scalar_select %p34, %s36, %s27
      %p38 = scmp.ge.s32.totalorder %s37, 2
      %s39 = scalar_select %p38, 0, %s37
      %s40 = ssub.s32 %s27, %s39
      %s41 = ssub.s32 %s28, %s35
      %s42 = sor.u32 %s40, %s41
      %p43 = scmp.eq.s32.totalorder %s42, 0
      %s45 = sadd.s32 %s44, 1
      %s46 = scalar_select %p43, %s44, %s45
      %p49 = pneg %p43
      %p50 = scmp.eq.s32.totalorder %s20, 1
      %p51 = por %p49, %p50
      %p52 = scmp.ne.s32.totalorder %s44, %s47
      %p53 = scmp.eq.s32.totalorder %s20, 0
      %p54 = por %p52, %p53
      %p55 = scmp.ne.s32.totalorder %s44, %s47
      %p56 = scmp.eq.s32.totalorder %s25, 1
      %p57 = por %p55, %p56
      %p58 = scmp.ne.s32.totalorder %s47, %s48
      %p59 = scmp.eq.s32.totalorder %s25, 0
      %p60 = por %p58, %p59
      %p61 = scmp.ne.s32.totalorder %s47, %s48
      %p62 = scmp.eq.s32.totalorder %s26, 1
      %p63 = por %p61, %p62
      %p65 = scmp.ne.s32.totalorder %s48, %s64
      %p66 = scmp.eq.s32.totalorder %s26, 0
      %p67 = por %p65, %p66
      %s68 = ssub.s32 %s27, %s39
      %p69 = scmp.eq.s32.totalorder %s68, 0
      %s71 = sadd.s32 %s70, 1
      %s72 = scalar_select %p69, %s70, %s71
      %p75 = pneg %p69
      %p76 = scmp.eq.s32.totalorder %s20, 1
      %p77 = por %p75, %p76
      %p78 = scmp.ne.s32.totalorder %s70, %s73
      %p79 = scmp.eq.s32.totalorder %s20, 0
      %p80 = por %p78, %p79
      %p81 = scmp.ne.s32.totalorder %s70, %s73
      %p82 = scmp.eq.s32.totalorder %s25, 1
      %p83 = por %p81, %p82
      %p84 = scmp.ne.s32.totalorder %s73, %s74
      %p85 = scmp.eq.s32.totalorder %s25, 0
      %p86 = por %p84, %p85
      %p87 = scmp.ne.s32.totalorder %s73, %s74
      %p88 = scmp.eq.s32.totalorder %s26, 1
      %p89 = por %p87, %p88
      %p91 = scmp.ne.s32.totalorder %s74, %s90
      %p92 = scmp.eq.s32.totalorder %s26, 0
      %p93 = por %p91, %p92
      %s95 = sadd.s32 %s94, 1
      %p98 = scmp.eq.s32.totalorder %s20, 1
      %p99 = scmp.ne.s32.totalorder %s94, %s96
      %p100 = scmp.eq.s32.totalorder %s20, 0
      %p101 = por %p99, %p100
      %p102 = scmp.ne.s32.totalorder %s94, %s96
      %p103 = scmp.eq.s32.totalorder %s25, 1
      %p104 = por %p102, %p103
      %p105 = scmp.ne.s32.totalorder %s96, %s97
      %p106 = scmp.eq.s32.totalorder %s25, 0
      %p107 = por %p105, %p106
      %p108 = scmp.ne.s32.totalorder %s96, %s97
      %p109 = scmp.eq.s32.totalorder %s26, 1
      %p110 = por %p108, %p109
      %p112 = scmp.ne.s32.totalorder %s97, %s111
      %p113 = scmp.eq.s32.totalorder %s26, 0
      %p114 = por %p112, %p113
      %s115 = ssub.s32 %s28, %s35
      %p116 = scmp.eq.s32.totalorder %s115, 0
      %s118 = sadd.s32 %s117, 1
      %s119 = scalar_select %p116, %s117, %s118
      %p122 = pneg %p116
      %p123 = scmp.eq.s32.totalorder %s20, 1
      %p124 = por %p122, %p123
      %p125 = scmp.ne.s32.totalorder %s117, %s120
      %p126 = scmp.eq.s32.totalorder %s20, 0
      %p127 = por %p125, %p126
      %p128 = scmp.ne.s32.totalorder %s117, %s120
      %p129 = scmp.eq.s32.totalorder %s25, 1
      %p130 = por %p128, %p129
      %p131 = scmp.ne.s32.totalorder %s120, %s121
      %p132 = scmp.eq.s32.totalorder %s25, 0
      %p133 = por %p131, %p132
      %p134 = scmp.ne.s32.totalorder %s120, %s121
      %p135 = scmp.eq.s32.totalorder %s26, 1
      %p136 = por %p134, %p135
      %p138 = scmp.ne.s32.totalorder %s121, %s137
      %p139 = scmp.eq.s32.totalorder %s26, 0
      %p140 = por %p138, %p139
      %s142 = sadd.s32 %s141, 1
      %p145 = scmp.eq.s32.totalorder %s20, 1
      %p146 = scmp.ne.s32.totalorder %s141, %s143
      %p147 = scmp.eq.s32.totalorder %s20, 0
      %p148 = por %p146, %p147
      %p149 = scmp.ne.s32.totalorder %s141, %s143
      %p150 = scmp.eq.s32.totalorder %s25, 1
      %p151 = por %p149, %p150
      %p152 = scmp.ne.s32.totalorder %s143, %s144
      %p153 = scmp.eq.s32.totalorder %s25, 0
      %p154 = por %p152, %p153
      %p155 = scmp.ne.s32.totalorder %s143, %s144
      %p156 = scmp.eq.s32.totalorder %s26, 1
      %p157 = por %p155, %p156
      %p159 = scmp.ne.s32.totalorder %s144, %s158
      %p160 = scmp.eq.s32.totalorder %s26, 0
      %p161 = por %p159, %p160
      %s163 = sadd.s32 %s162, 1
      %p166 = scmp.eq.s32.totalorder %s20, 1
      %p167 = scmp.ne.s32.totalorder %s162, %s164
      %p168 = scmp.eq.s32.totalorder %s20, 0
      %p169 = por %p167, %p168
      %p170 = scmp.ne.s32.totalorder %s162, %s164
      %p171 = scmp.eq.s32.totalorder %s25, 1
      %p172 = por %p170, %p171
      %p173 = scmp.ne.s32.totalorder %s164, %s165
      %p174 = scmp.eq.s32.totalorder %s25, 0
      %p175 = por %p173, %p174
      %p176 = scmp.ne.s32.totalorder %s164, %s165
      %p177 = scmp.eq.s32.totalorder %s26, 1
      %p178 = por %p176, %p177
      %p180 = scmp.ne.s32.totalorder %s165, %s179
      %p181 = scmp.eq.s32.totalorder %s26, 0
      %p182 = por %p180, %p181
      %s183 = ssub.s32 %s27, %s39
      %s184 = ssub.s32 %s28, %s35
      %s185 = sor.u32 %s183, %s184
      %p186 = scmp.eq.s32.totalorder %s185, 0
      %s188 = sadd.s32 %s187, 1
      %s189 = scalar_select %p186, %s187, %s188
      %p192 = pneg %p186
      %p193 = scmp.eq.s32.totalorder %s20, 1
      %p194 = por %p192, %p193
      %p195 = scmp.ne.s32.totalorder %s187, %s190
      %p196 = scmp.eq.s32.totalorder %s20, 0
      %p197 = por %p195, %p196
      %p198 = scmp.ne.s32.totalorder %s187, %s190
      %p199 = scmp.eq.s32.totalorder %s25, 1
      %p200 = por %p198, %p199
      %p201 = scmp.ne.s32.totalorder %s190, %s191
      %p202 = scmp.eq.s32.totalorder %s25, 0
      %p203 = por %p201, %p202
      %p204 = scmp.ne.s32.totalorder %s190, %s191
      %p205 = scmp.eq.s32.totalorder %s26, 1
      %p206 = por %p204, %p205
      %p208 = scmp.ne.s32.totalorder %s191, %s207
      %p209 = scmp.eq.s32.totalorder %s26, 0
      %p210 = por %p208, %p209
      %p211 = scmp.le.s32.totalorder 1, %s20
      %p212 = scmp.lt.s32.totalorder %s20, 3
      %p213 = pnand %p211, %p212
      %p214 = pneg %p213
      // Predicated region
      $region9: #{tpu_custom_call.1} parent=5 // pred_check
        _
      $region10: #{tpu_custom_call.1} parent=5 // pred_check_branch
        %216 = sbr.rel (%p213) target = $region12
      $region11: #{tpu_custom_call.1} parent=5 // pred_region
        %s217 = ssub.s32 %s20, 1
        // Predicated region
        $region13: #{tpu_custom_call.1} parent=11 // pred_check
          %p218 = pneg %p107
        $region14: #{tpu_custom_call.1} parent=11 // pred_check_branch
          %220 = sbr.rel (%p218) target = $region16
        $region15: #{tpu_custom_call.1} parent=11 // pred_region
          _
        $region16: #{tpu_custom_call.1} parent=11 // pred_fallthru
          _
        // Predicated region
        $region17: #{tpu_custom_call.1} parent=11 // pred_check
          %p221 = pneg %p133
        $region18: #{tpu_custom_call.1} parent=11 // pred_check_branch
          %223 = sbr.rel (%p221) target = $region20
        $region19: #{tpu_custom_call.1} parent=11 // pred_region
          %s224 = smul.u32 2, %s30
          %s226 = ssub.s32 2048, 2048
          %227 = vsyncadd [#allocation7], %s226
          %s228 = smul.addr %s224, 128
          %s229 = scalar_lea.hbm %s3, %s228
          %s230 = sshll.u32 [#allocation6], 4
          %s231 = int_to_ptr.vmem [resolvable:$true] %s230
          %236 = dma.hbm_to_vmem [thread:$0]  %s229, 2048, %s231, [#allocation7], 256, 256, 16
        $region20: #{tpu_custom_call.1} parent=11 // pred_fallthru
          _
        // Predicated region
        $region21: #{tpu_custom_call.1} parent=11 // pred_check
          %p237 = pneg %p154
        $region22: #{tpu_custom_call.1} parent=11 // pred_check_branch
          %239 = sbr.rel (%p237) target = $region24
        $region23: #{tpu_custom_call.1} parent=11 // pred_region
          _
        $region24: #{tpu_custom_call.1} parent=11 // pred_fallthru
          _
        // Predicated region
        $region25: #{tpu_custom_call.1} parent=11 // pred_check
          %p240 = pneg %p175
        $region26: #{tpu_custom_call.1} parent=11 // pred_check_branch
          %242 = sbr.rel (%p240) target = $region28
        $region27: #{tpu_custom_call.1} parent=11 // pred_region
          _
        $region28: #{tpu_custom_call.1} parent=11 // pred_fallthru
          _
      $region12: #{tpu_custom_call.1} parent=5 // pred_fallthru
        _
      %p243 = scmp.lt.s32.totalorder %s20, 2
      // Predicated region
      $region29: #{tpu_custom_call.1} parent=5 // pred_check
        %p244 = pneg %p243
      $region30: #{tpu_custom_call.1} parent=5 // pred_check_branch
        %246 = sbr.rel (%p244) target = $region32
      $region31: #{tpu_custom_call.1} parent=5 // pred_region
        // Predicated region
        $region33: #{tpu_custom_call.1} parent=31 // pred_check
          %p247 = pneg %p54
        $region34: #{tpu_custom_call.1} parent=31 // pred_check_branch
          %249 = sbr.rel (%p247) target = $region36
        $region35: #{tpu_custom_call.1} parent=31 // pred_region
          %s250 = smul.u32 2, %s28
          %p251 = scmp.lt.s32.totalorder %s27, 1
          %s252 = scalar_select %p251, %s27, 1
          %p253 = scmp.lt.s32.totalorder %s250, 1
          %s254 = scalar_select %p253, %s250, 1
          %s255 = smul.addr %s252, 2
          %s256 = sadd.s32 %s254, %s255
          %s257 = smul.addr %s256, 4
          %s258 = scalar_lea.vmem %s0, %s257
          %s259 = smul.u32 2, %s28
        $region36: #{tpu_custom_call.1} parent=31 // pred_fallthru
          _
        // Predicated region
        $region37: #{tpu_custom_call.1} parent=31 // pred_check
          %p260 = pneg %p80
        $region38: #{tpu_custom_call.1} parent=31 // pred_check_branch
          %262 = sbr.rel (%p260) target = $region40
        $region39: #{tpu_custom_call.1} parent=31 // pred_region
          %s263 = sand.u32 %s70, 1
          %s264 = scalar_lea.sflag [#allocation4], %s263
          %s265 = sand.u32 %s70, 1
          %s266 = smul.addr %s265, 32
          %s267 = scalar_lea.vmem [#allocation3], %s266
          %s269 = ssub.s32 512, 512
          %270 = vsyncadd %s264, %s269
          %s271 = smul.addr %s27, 4
          %s272 = smul.addr %s271, 128
          %s273 = scalar_lea.hbm %s1, %s272
          %s274 = sshll.u32 %s267, 4
          %s275 = int_to_ptr.vmem [resolvable:$true] %s274
          %280 = dma.hbm_to_vmem [thread:$0]  %s273, 512, %s275, %s264, 128, 128, 8
        $region40: #{tpu_custom_call.1} parent=31 // pred_fallthru
          _
      $region32: #{tpu_custom_call.1} parent=5 // pred_fallthru
        _
      %p281 = scmp.le.s32.totalorder 1, %s20
      %p282 = scmp.lt.s32.totalorder %s20, 3
      %p283 = pnand %p281, %p282
      %p284 = pneg %p283
      // Predicated region
      $region41: #{tpu_custom_call.1} parent=5 // pred_check
        _
      $region42: #{tpu_custom_call.1} parent=5 // pred_check_branch
        %286 = sbr.rel (%p283) target = $region44
      $region43: #{tpu_custom_call.1} parent=5 // pred_region
        %s287 = ssub.s32 %s20, 1
        %s288 = sand.u32 %s73, 1
        %s289 = scalar_lea.sflag [#allocation4], %s288
        %s290 = sand.u32 %s73, 1
        %s291 = smul.addr %s290, 32
        %s292 = scalar_lea.vmem [#allocation3], %s291
        // Predicated region
        $region45: #{tpu_custom_call.1} parent=43 // pred_check
          %p293 = pneg %p86
        $region46: #{tpu_custom_call.1} parent=43 // pred_check_branch
          %295 = sbr.rel (%p293) target = $region48
        $region47: #{tpu_custom_call.1} parent=43 // pred_region
          %296 = dma.done %s289, 512
        $region48: #{tpu_custom_call.1} parent=43 // pred_fallthru
          _
        // Predicated region
        $region49: #{tpu_custom_call.1} parent=43 // pred_check
          %p297 = pneg %p133
        $region50: #{tpu_custom_call.1} parent=43 // pred_check_branch
          %299 = sbr.rel (%p297) target = $region52
        $region51: #{tpu_custom_call.1} parent=43 // pred_region
          %300 = dma.done [#allocation7], 2048
        $region52: #{tpu_custom_call.1} parent=43 // pred_fallthru
          _
        %s301 = smul.u32 2, %s30
        %p302 = scmp.lt.s32.totalorder %s29, 1
        %s303 = scalar_select %p302, %s29, 1
        %p304 = scmp.lt.s32.totalorder %s301, 1
        %s305 = scalar_select %p304, %s301, 1
        %s306 = smul.addr %s303, 2
        %s307 = sadd.s32 %s305, %s306
        %s308 = smul.addr %s307, 4
        %s309 = scalar_lea.vmem %s0, %s308
        %p310 = pneg %p60
        %p311 = pneg %p57
        %s312 = sand.u32 %s73, 1
        %s313 = scalar_lea.sflag [#allocation4], %s312
        %s314 = sand.u32 %s73, 1
        %s315 = smul.addr %s314, 32
        %s316 = scalar_lea.vmem [#allocation3], %s315
        %p317 = pneg %p86
        %p318 = pneg %p83
        %p319 = pneg %p107
        %p320 = pneg %p104
        %p321 = pneg %p133
        %p322 = pneg %p130
        %p323 = pneg %p154
        %p324 = pneg %p151
        %p325 = pneg %p175
        %p326 = pneg %p172
        %p327 = pneg %p203
        %p328 = pneg %p200
        %s329 = sand.u32 %s190, 1
        %s330 = scalar_lea.sflag [#allocation5], %s329
        %s331 = sand.u32 %s190, 1
        %s332 = smul.addr %s331, 8
        %s333 = scalar_lea.vmem [#allocation8], %s332
        %s334 = smul.u32 2, %s30
        %p335 = scmp.lt.s32.totalorder %s29, 1
        %s336 = scalar_select %p335, %s29, 1
        %p337 = scmp.lt.s32.totalorder %s334, 1
        %s338 = scalar_select %p337, %s334, 1
        %s339 = smul.addr %s336, 2
        %s340 = sadd.s32 %s338, %s339
        %s341 = smul.addr %s340, 4
        %s342 = scalar_lea.vmem %s0, %s341
        %s343 = smul.u32 2, %s30
        %s344 = smul.u32 2, %s30
        %s345 = smul.u32 2, %s30
        %v346 = vld [vmem:[%s342] sm:$0xff]
        %v347 = vld [vmem:[%s2] sm:$0xff]
        %v348 = vld [vmem:[%s2 + $0x8] sm:$0xff]
        %v349 = vld [vmem:[%s2 + $0x10] sm:$0xff]
        %v350 = vld [vmem:[%s2 + $0x18] sm:$0xff]
        %v351 = vld [vmem:[%s292] sm:$0xff]
        %v352 = vld [vmem:[%s292 + $0x8] sm:$0xff]
        %v353 = vld [vmem:[%s292 + $0x10] sm:$0xff]
        %v354 = vld [vmem:[%s292 + $0x18] sm:$0xff]
        %v355 = vld [vmem:[#allocation6] sm:$0xff]
        %v356 = vld [vmem:[#allocation6 + $0x8] sm:$0xff]
        %v357 = vld [vmem:[#allocation6 + $0x10] sm:$0xff]
        %v358 = vld [vmem:[#allocation6 + $0x18] sm:$0xff]
        %v359 = vld [vmem:[#allocation6 + $0x20] sm:$0xff]
        %v360 = vld [vmem:[#allocation6 + $0x28] sm:$0xff]
        %v361 = vld [vmem:[#allocation6 + $0x30] sm:$0xff]
        %v362 = vld [vmem:[#allocation6 + $0x38] sm:$0xff]
        %v363 = vld [vmem:[#allocation6 + $0x40] sm:$0xff]
        %v364 = vld [vmem:[#allocation6 + $0x48] sm:$0xff]
        %v365 = vld [vmem:[#allocation6 + $0x50] sm:$0xff]
        %v366 = vld [vmem:[#allocation6 + $0x58] sm:$0xff]
        %v367 = vld [vmem:[#allocation6 + $0x60] sm:$0xff]
        %v368 = vld [vmem:[#allocation6 + $0x68] sm:$0xff]
        %v369 = vld [vmem:[#allocation6 + $0x70] sm:$0xff]
        %v370 = vld [vmem:[#allocation6 + $0x78] sm:$0xff]
        %vm371 = vcmask 523264
        %v373 = vsel %vm371, %v351, 0
        %v376 = vsel %vm371, %v352, 0
        %v379 = vsel %vm371, %v353, 0
        %v382 = vsel %vm371, %v354, 0
        %384 = vmatprep.subr.mxu0 %v356
        %385 = vmatpush1.msra.mxu0 %v355
        %386 = vmatprep.subr.mxu0 %v358
        %387 = vmatpush1.msra.mxu0 %v357
        %388 = vmatprep.subr.mxu0 %v360
        %389 = vmatpush1.msra.mxu0 %v359
        %390 = vmatprep.subr.mxu0 %v362
        %391 = vmatpush1.msra.mxu0 %v361
        %392 = vmatprep.subr.mxu0 %v364
        %393 = vmatpush1.msra.mxu0 %v363
        %394 = vmatprep.subr.mxu0 %v366
        %395 = vmatpush1.msra.mxu0 %v365
        %396 = vmatprep.subr.mxu0 %v368
        %397 = vmatpush1.msra.mxu0 %v367
        %398 = vmatprep.subr.mxu0 %v370
        %399 = vmatpush1.msra.mxu0 %v369
        %400 = vmatprep.subr.mxu0 0.0
        %401 = vmatpush1.msra.mxu0 0.0
        %402 = vmatprep.subr.mxu0 0.0
        %403 = vmatpush1.msra.mxu0 0.0
        %404 = vmatprep.subr.mxu0 0.0
        %405 = vmatpush1.msra.mxu0 0.0
        %406 = vmatprep.subr.mxu0 0.0
        %407 = vmatpush1.msra.mxu0 0.0
        %408 = vmatprep.subr.mxu0 0.0
        %409 = vmatpush1.msra.mxu0 0.0
        %410 = vmatprep.subr.mxu0 0.0
        %411 = vmatpush1.msra.mxu0 0.0
        %412 = vmatprep.subr.mxu0 0.0
        %413 = vmatpush1.msra.mxu0 0.0
        %414 = vmatprep.subr.mxu0 0.0
        %415 = vmatpush1.msra.mxu0 0.0
        %416 = vmatprep.subr.mxu0 0.0
        %417 = vmatpush1.msra.mxu0 0.0
        %418 = vmatprep.subr.mxu0 0.0
        %419 = vmatpush1.msra.mxu0 0.0
        %420 = vmatprep.subr.mxu0 0.0
        %421 = vmatpush1.msra.mxu0 0.0
        %422 = vmatprep.subr.mxu0 0.0
        %423 = vmatpush1.msra.mxu0 0.0
        %424 = vmatprep.subr.mxu0 0.0
        %425 = vmatpush1.msra.mxu0 0.0
        %426 = vmatprep.subr.mxu0 0.0
        %427 = vmatpush1.msra.mxu0 0.0
        %428 = vmatprep.subr.mxu0 0.0
        %429 = vmatpush1.msra.mxu0 0.0
        %430 = vmatprep.subr.mxu0 0.0
        %431 = vmatpush1.msra.mxu0 0.0
        %432 = vmatprep.subr.mxu0 0.0
        %433 = vmatpush1.msra.mxu0 0.0
        %434 = vmatprep.subr.mxu0 0.0
        %435 = vmatpush1.msra.mxu0 0.0
        %436 = vmatprep.subr.mxu0 0.0
        %437 = vmatpush1.msra.mxu0 0.0
        %438 = vmatprep.subr.mxu0 0.0
        %439 = vmatpush1.msra.mxu0 0.0
        %440 = vmatprep.subr.mxu0 0.0
        %441 = vmatpush1.msra.mxu0 0.0
        %442 = vmatprep.subr.mxu0 0.0
        %443 = vmatpush1.msra.mxu0 0.0
        %444 = vmatprep.subr.mxu0 0.0
        %445 = vmatpush1.msra.mxu0 0.0
        %446 = vmatprep.subr.mxu0 0.0
        %447 = vmatpush1.msra.mxu0 0.0
        %448 = vmatprep.mubr.f32.mxu0 0.0
        %449 = vmatmul.mubr.f32.gmra.mrb[0].mxu0 %v373
        %v450 = vpop.f32.mrb[0].mxu0
        %v451 = vadd.f32 0.0, %v450
        %v452 = vpop.f32.mrb[0].mxu0
        %v453 = vadd.f32 0.0, %v452
        %454 = vmatprep.mubr.f32.mxu0 0.0
        %455 = vmatmul.mubr.f32.gmra.mrb[0].mxu0 %v376
        %v456 = vpop.f32.mrb[0].mxu0
        %v457 = vadd.f32 0.0, %v456
        %v458 = vpop.f32.mrb[0].mxu0
        %v459 = vadd.f32 0.0, %v458
        %460 = vmatprep.mubr.f32.mxu0 0.0
        %461 = vmatmul.mubr.f32.gmra.mrb[0].mxu0 %v379
        %v462 = vpop.f32.mrb[0].mxu0
        %v463 = vadd.f32 0.0, %v462
        %v464 = vpop.f32.mrb[0].mxu0
        %v465 = vadd.f32 0.0, %v464
        %466 = vmatprep.mubr.f32.mxu0 0.0
        %467 = vmatmul.mubr.f32.gmra.mrb[0].mxu0 %v382
        %v468 = vpop.f32.mrb[0].mxu0
        %v469 = vadd.f32 0.0, %v468
        %v470 = vpop.f32.mrb[0].mxu0
        %v471 = vadd.f32 0.0, %v470
        %472 = vdwg.mxu0
        %v474 = vcombine.high %v346, %v346
        %vm475 = vcmask 31744
        %v477 = vsel %vm475, %v347, 0
        %v480 = vsel %vm475, %v348, 0
        %v483 = vsel %vm475, %v349, 0
        %v486 = vsel %vm475, %v350, 0
        %vm488 = vcmask 1043456
        %v489 = vsel %vm488, %v346, 0
        %v491 = vsel %vm488, %v474, 0
        %493 = vmatprep.subr.mxu0 %v491
        %494 = vmatpush1.msra.mxu0 %v489
        %495 = vmatprep.subr.mxu0 0.0
        %496 = vmatpush1.msra.mxu0 0.0
        %497 = vmatprep.subr.mxu0 0.0
        %498 = vmatpush1.msra.mxu0 0.0
        %499 = vmatprep.subr.mxu0 0.0
        %500 = vmatpush1.msra.mxu0 0.0
        %501 = vmatprep.subr.mxu0 0.0
        %502 = vmatpush1.msra.mxu0 0.0
        %503 = vmatprep.subr.mxu0 0.0
        %504 = vmatpush1.msra.mxu0 0.0
        %505 = vmatprep.subr.mxu0 0.0
        %506 = vmatpush1.msra.mxu0 0.0
        %507 = vmatprep.subr.mxu0 0.0
        %508 = vmatpush1.msra.mxu0 0.0
        %509 = vmatprep.subr.mxu0 0.0
        %510 = vmatpush1.msra.mxu0 0.0
        %511 = vmatprep.subr.mxu0 0.0
        %512 = vmatpush1.msra.mxu0 0.0
        %513 = vmatprep.subr.mxu0 0.0
        %514 = vmatpush1.msra.mxu0 0.0
        %515 = vmatprep.subr.mxu0 0.0
        %516 = vmatpush1.msra.mxu0 0.0
        %517 = vmatprep.subr.mxu0 0.0
        %518 = vmatpush1.msra.mxu0 0.0
        %519 = vmatprep.subr.mxu0 0.0
        %520 = vmatpush1.msra.mxu0 0.0
        %521 = vmatprep.subr.mxu0 0.0
        %522 = vmatpush1.msra.mxu0 0.0
        %523 = vmatprep.subr.mxu0 0.0
        %524 = vmatpush1.msra.mxu0 0.0
        %525 = vmatprep.subr.mxu0 0.0
        %526 = vmatpush1.msra.mxu0 0.0
        %527 = vmatprep.subr.mxu0 0.0
        %528 = vmatpush1.msra.mxu0 0.0
        %529 = vmatprep.subr.mxu0 0.0
        %530 = vmatpush1.msra.mxu0 0.0
        %531 = vmatprep.subr.mxu0 0.0
        %532 = vmatpush1.msra.mxu0 0.0
        %533 = vmatprep.subr.mxu0 0.0
        %534 = vmatpush1.msra.mxu0 0.0
        %535 = vmatprep.subr.mxu0 0.0
        %536 = vmatpush1.msra.mxu0 0.0
        %537 = vmatprep.subr.mxu0 0.0
        %538 = vmatpush1.msra.mxu0 0.0
        %539 = vmatprep.subr.mxu0 0.0
        %540 = vmatpush1.msra.mxu0 0.0
        %541 = vmatprep.subr.mxu0 0.0
        %542 = vmatpush1.msra.mxu0 0.0
        %543 = vmatprep.subr.mxu0 0.0
        %544 = vmatpush1.msra.mxu0 0.0
        %545 = vmatprep.subr.mxu0 0.0
        %546 = vmatpush1.msra.mxu0 0.0
        %547 = vmatprep.subr.mxu0 0.0
        %548 = vmatpush1.msra.mxu0 0.0
        %549 = vmatprep.subr.mxu0 0.0
        %550 = vmatpush1.msra.mxu0 0.0
        %551 = vmatprep.subr.mxu0 0.0
        %552 = vmatpush1.msra.mxu0 0.0
        %553 = vmatprep.subr.mxu0 0.0
        %554 = vmatpush1.msra.mxu0 0.0
        %555 = vmatprep.subr.mxu0 0.0
        %556 = vmatpush1.msra.mxu0 0.0
        %557 = vmatprep.mubr.f32.mxu0 0.0
        %558 = vmatmul.mubr.f32.gmra.mrb[0].mxu0 %v477
        %v559 = vpop.f32.mrb[0].mxu0
        %v560 = vadd.f32 %v451, %v559
        %v561 = vpop.f32.mrb[0].mxu0
        %v562 = vadd.f32 %v453, %v561
        %563 = vmatprep.mubr.f32.mxu0 0.0
        %564 = vmatmul.mubr.f32.gmra.mrb[0].mxu0 %v480
        %v565 = vpop.f32.mrb[0].mxu0
        %v566 = vadd.f32 %v457, %v565
        %v567 = vpop.f32.mrb[0].mxu0
        %v568 = vadd.f32 %v459, %v567
        %569 = vmatprep.mubr.f32.mxu0 0.0
        %570 = vmatmul.mubr.f32.gmra.mrb[0].mxu0 %v483
        %v571 = vpop.f32.mrb[0].mxu0
        %v572 = vadd.f32 %v463, %v571
        %v573 = vpop.f32.mrb[0].mxu0
        %v574 = vadd.f32 %v465, %v573
        %575 = vmatprep.mubr.f32.mxu0 0.0
        %576 = vmatmul.mubr.f32.gmra.mrb[0].mxu0 %v486
        %v577 = vpop.f32.mrb[0].mxu0
        %v578 = vadd.f32 %v469, %v577
        %v579 = vpop.f32.mrb[0].mxu0
        %v580 = vadd.f32 %v471, %v579
        %581 = vdwg.mxu0
        %v582 = vmax.f32 %v560, 0.0
        %v583 = vmax.f32 %v562, 0.0
        %v584 = vmax.f32 %v566, 0.0
        %v585 = vmax.f32 %v568, 0.0
        %v586 = vmax.f32 %v572, 0.0
        %v587 = vmax.f32 %v574, 0.0
        %v588 = vmax.f32 %v578, 0.0
        %v589 = vmax.f32 %v580, 0.0
        %v590 = vld [vmem:[%s4] sm:$0xff]
        %vm591 = vcmask 261120
        %v593 = vsel %vm591, %v590, 0
        %595 = vmatprep.subr.mxu0 %v583
        %596 = vmatpush1.msra.mxu0 %v582
        %597 = vmatprep.subr.mxu0 %v585
        %598 = vmatpush1.msra.mxu0 %v584
        %599 = vmatprep.subr.mxu0 %v587
        %600 = vmatpush1.msra.mxu0 %v586
        %601 = vmatprep.subr.mxu0 %v589
        %602 = vmatpush1.msra.mxu0 %v588
        %603 = vmatprep.subr.mxu0 0.0
        %604 = vmatpush1.msra.mxu0 0.0
        %605 = vmatprep.subr.mxu0 0.0
        %606 = vmatpush1.msra.mxu0 0.0
        %607 = vmatprep.subr.mxu0 0.0
        %608 = vmatpush1.msra.mxu0 0.0
        %609 = vmatprep.subr.mxu0 0.0
        %610 = vmatpush1.msra.mxu0 0.0
        %611 = vmatprep.subr.mxu0 0.0
        %612 = vmatpush1.msra.mxu0 0.0
        %613 = vmatprep.subr.mxu0 0.0
        %614 = vmatpush1.msra.mxu0 0.0
        %615 = vmatprep.subr.mxu0 0.0
        %616 = vmatpush1.msra.mxu0 0.0
        %617 = vmatprep.subr.mxu0 0.0
        %618 = vmatpush1.msra.mxu0 0.0
        %619 = vmatprep.subr.mxu0 0.0
        %620 = vmatpush1.msra.mxu0 0.0
        %621 = vmatprep.subr.mxu0 0.0
        %622 = vmatpush1.msra.mxu0 0.0
        %623 = vmatprep.subr.mxu0 0.0
        %624 = vmatpush1.msra.mxu0 0.0
        %625 = vmatprep.subr.mxu0 0.0
        %626 = vmatpush1.msra.mxu0 0.0
        %627 = vmatprep.subr.mxu0 0.0
        %628 = vmatpush1.msra.mxu0 0.0
        %629 = vmatprep.subr.mxu0 0.0
        %630 = vmatpush1.msra.mxu0 0.0
        %631 = vmatprep.subr.mxu0 0.0
        %632 = vmatpush1.msra.mxu0 0.0
        %633 = vmatprep.subr.mxu0 0.0
        %634 = vmatpush1.msra.mxu0 0.0
        %635 = vmatprep.subr.mxu0 0.0
        %636 = vmatpush1.msra.mxu0 0.0
        %637 = vmatprep.subr.mxu0 0.0
        %638 = vmatpush1.msra.mxu0 0.0
        %639 = vmatprep.subr.mxu0 0.0
        %640 = vmatpush1.msra.mxu0 0.0
        %641 = vmatprep.subr.mxu0 0.0
        %642 = vmatpush1.msra.mxu0 0.0
        %643 = vmatprep.subr.mxu0 0.0
        %644 = vmatpush1.msra.mxu0 0.0
        %645 = vmatprep.subr.mxu0 0.0
        %646 = vmatpush1.msra.mxu0 0.0
        %647 = vmatprep.subr.mxu0 0.0
        %648 = vmatpush1.msra.mxu0 0.0
        %649 = vmatprep.subr.mxu0 0.0
        %650 = vmatpush1.msra.mxu0 0.0
        %651 = vmatprep.subr.mxu0 0.0
        %652 = vmatpush1.msra.mxu0 0.0
        %653 = vmatprep.subr.mxu0 0.0
        %654 = vmatpush1.msra.mxu0 0.0
        %655 = vmatprep.subr.mxu0 0.0
        %656 = vmatpush1.msra.mxu0 0.0
        %657 = vmatprep.subr.mxu0 0.0
        %658 = vmatpush1.msra.mxu0 0.0
        %659 = vmatprep.mubr.f32.mxu0 0.0
        %660 = vmatmul.mubr.f32.gmra.mrb[0].mxu0 %v593
        %v661 = vpop.f32.mrb[0].mxu0
        %v662 = vadd.f32 0.0, %v661
        %v663 = vpop.f32.mrb[0].mxu0
        %v664 = vadd.f32 0.0, %v663
        %665 = vdwg.mxu0
        %s666 = sld [smem:[#allocation2]]
        %v667 = vstv %s666
        %v668 = vadd.f32 %v662, %v667
        %v669 = vadd.f32 %v664, %v667
        %v670 = vxor.u32 %v668, 2147483648
        %v671 = vxor.u32 %v669, 2147483648
        %v672 = vmul.f32 %v670, 1.442695
        %v673 = vpow.pop %v672
        %v674 = vmul.f32 %v671, 1.442695
        %v675 = vpow.pop %v674
        %v676 = vadd.f32 %v673, 1.0
        %v677 = vadd.f32 %v675, 1.0
        %v678 = vrcp.pop %v676
        %v679 = vmul.f32 1.0, %v678
        %v680 = vrcp.pop %v677
        %v681 = vmul.f32 1.0, %v680
        %v682 = vlaneseq
        %v683 = vshrl.u32 %v682, 7
        %v684 = vsub.s32 0, %v683
        %v685 = vrot.slane %v679, %v684
        %v686 = vlaneseq
        %v687 = vshrl.u32 %v686, 7
        %v688 = vsub.s32 0, %v687
        %v689 = vrot.slane %v681, %v688
        %v691 = vmul.f32 %v685, %v346
        %v692 = vmul.f32 %v689, %v474
        %v695 = vcombine.low %v691, %v692
        %697 = vst [vmem:[%s333] sm:$0xff] %v695
        %s698 = sand.u32 %s190, 1
        %s699 = scalar_lea.sflag [#allocation5], %s698
        %s700 = sand.u32 %s190, 1
        %s701 = smul.addr %s700, 8
        %s702 = scalar_lea.vmem [#allocation8], %s701
        // Predicated region
        $region53: #{tpu_custom_call.1} parent=43 // pred_check
          %p703 = pneg %p200
        $region54: #{tpu_custom_call.1} parent=43 // pred_check_branch
          %705 = sbr.rel (%p703) target = $region56
        $region55: #{tpu_custom_call.1} parent=43 // pred_region
          %s706 = smul.u32 2, %s30
          %s708 = ssub.s32 128, 128
          %709 = vsyncadd %s699, %s708
          %s710 = smul.addr %s29, 2
          %s711 = sadd.s32 %s706, %s710
          %s712 = smul.addr %s711, 64
          %s713 = scalar_lea.hbm %s6, %s712
          %s715 = sshll.u32 %s702, 4
          %s716 = int_to_ptr.vmem [resolvable:$true] %s715
          %718 = dma.vmem_to_hbm [thread:$0]  %s716, 128, %s713, %s699
        $region56: #{tpu_custom_call.1} parent=43 // pred_fallthru
          _
      $region44: #{tpu_custom_call.1} parent=5 // pred_fallthru
        _
      %p719 = scmp.le.s32.totalorder 2, %s20
      // Predicated region
      $region57: #{tpu_custom_call.1} parent=5 // pred_check
        %p720 = pneg %p719
      $region58: #{tpu_custom_call.1} parent=5 // pred_check_branch
        %722 = sbr.rel (%p720) target = $region60
      $region59: #{tpu_custom_call.1} parent=5 // pred_region
        %s723 = ssub.s32 %s20, 2
        // Predicated region
        $region61: #{tpu_custom_call.1} parent=59 // pred_check
          %p724 = pneg %p206
        $region62: #{tpu_custom_call.1} parent=59 // pred_check_branch
          %726 = sbr.rel (%p724) target = $region64
        $region63: #{tpu_custom_call.1} parent=59 // pred_region
          %s727 = sand.u32 %s191, 1
          %s728 = scalar_lea.sflag [#allocation5], %s727
          %s729 = sand.u32 %s191, 1
          %s730 = smul.addr %s729, 8
          %s731 = scalar_lea.vmem [#allocation8], %s730
          %732 = dma.done %s728, 128
        $region64: #{tpu_custom_call.1} parent=59 // pred_fallthru
          _
      $region60: #{tpu_custom_call.1} parent=5 // pred_fallthru
        _
    $region6: #{tpu_custom_call.1} parent=1 // loop_footer
      %s24 = sadd.s32 1, %s20
    $region7: #{tpu_custom_call.1} parent=1 // loop_footer_branch
      %19 = sbr.rel target = $region3
    $region8: #{tpu_custom_call.1} parent=1 // loop_exit
      _
    %733 = vsyncpa [#allocation4], 1
    %s734 = scalar_lea.sflag [#allocation4], 1
    %735 = vsyncpa %s734, 1
    %736 = vsyncpa [#allocation7], 1
    %737 = vsyncpa [#allocation5], 1
    %s738 = scalar_lea.sflag [#allocation5], 1
    %739 = vsyncpa %s738, 1

</llo_original>
